<compile_context>
chip_gen: v5e
topology: v5e:2x2
jax: 0.10.0
libtpu: 0.0.40
codegen_flags: <defaults>
</compile_context>

<pallas_src>
import jax
import jax.numpy as jnp
from jax.experimental import pallas as pl
from jax.experimental.pallas import tpu as pltpu

_BN_EPS = 1e-5
_COMPUTE_DTYPE = jnp.bfloat16          # MXU matmul input dtype (f32 accumulation)
_VMEM_LIMIT_BYTES = 32 * 1024 * 1024   # explicit scoped-VMEM limit (safe v5e..v7x)
_VMEM_TILE_BUDGET = 20 * 1024 * 1024   # budget for double-buffered tiles


def _largest_divisor_at_most(n, cap):
    cap = max(1, min(n, cap))
    for t in range(cap, 0, -1):
        if n % t == 0:
            return t
    return 1


# ---------------------------------------------------------------------------
# Kernel 1: ConvTranspose2d(kernel=(2,2), stride=2) with fused pixel-shuffle.
# stride == kernel -> no overlap: every input pixel produces a 2x2xCout patch.
# The kernel writes output laid out as (B, H, kh, W, kw*Cout) so the wrapper's
# reshape to (B, 2H, 2W, Cout) is a pure row-major reshape (no HBM transpose).
# ---------------------------------------------------------------------------
def _tconv_kernel(x_ref, w_ref, b_ref, o_ref):
    # x_ref: (1, TH, W, Cin) bf16;  w_ref: (2, Cin, 2*Cout) bf16
    # b_ref: (1, 2*Cout) f32;       o_ref: (1, TH, 2, W, 2*Cout)
    th, w_dim, cin = x_ref.shape[1], x_ref.shape[2], x_ref.shape[3]
    c2 = o_ref.shape[4]
    xf = x_ref[0].reshape(th * w_dim, cin)
    bias = b_ref[...]
    for kh in range(2):
        y = jnp.dot(xf, w_ref[kh], preferred_element_type=jnp.float32) + bias
        o_ref[0, :, kh, :, :] = y.reshape(th, w_dim, c2).astype(o_ref.dtype)


def transpose_conv_2x2_s2(x_nhwc, w_t, b_t, out_dtype=_COMPUTE_DTYPE):
    """x_nhwc: (B,H,W,Cin); w_t: (Cin,Cout,2,2) [torch layout]; b_t: (Cout,)."""
    B, H, W, Cin = x_nhwc.shape
    Cout = w_t.shape[1]
    C2 = 2 * Cout
    x = x_nhwc.astype(_COMPUTE_DTYPE)
    # (Cin,Cout,kh,kw) -> (kh,Cin,kw,Cout) -> (2, Cin, 2*Cout); columns ordered (kw, cout)
    w_r = jnp.transpose(w_t, (2, 0, 3, 1)).reshape(2, Cin, C2).astype(_COMPUTE_DTYPE)
    b_r = jnp.tile(b_t, 2).reshape(1, C2).astype(jnp.float32)

    # Row-band tile sized to fit the double-buffered working set in VMEM
    # (conservative 4-byte estimate keeps it safe on v7x's 64 MiB VMEM too).
    row_bytes = 4 * (W * Cin + 2 * W * C2)
    th_cap = max(1, _VMEM_TILE_BUDGET // (2 * row_bytes))
    TH = _largest_divisor_at_most(H, th_cap)

    out6 = pl.pallas_call(
        _tconv_kernel,
        out_shape=jax.ShapeDtypeStruct((B, H, 2, W, C2), out_dtype),
        grid=(B, H // TH),
        in_specs=[
            pl.BlockSpec((1, TH, W, Cin), lambda b, t: (b, t, 0, 0)),
            pl.BlockSpec((2, Cin, C2), lambda b, t: (0, 0, 0)),
            pl.BlockSpec((1, C2), lambda b, t: (0, 0)),
        ],
        out_specs=pl.BlockSpec((1, TH, 2, W, C2), lambda b, t: (b, t, 0, 0, 0)),
        compiler_params=pltpu.CompilerParams(
            dimension_semantics=("parallel", "parallel"),
            vmem_limit_bytes=_VMEM_LIMIT_BYTES,
        ),
    )(x, w_r, b_r)
    # (B,H,2,W,2*Cout) -> (B,2H,2W,Cout): pure reshape, the kernel already
    # interleaved (kh, kw) into the right memory positions.
    return out6.reshape(B, 2 * H, 2 * W, Cout)


# ---------------------------------------------------------------------------
# Kernel 2: fused [concat] + Conv2d(3x3, s=1, pad) + BatchNorm2d(eval) + ReLU.
# The kernel accepts n_in channel-slices of the (virtually concatenated) input
# plus the matching Cin-slices of the conv weight, so the crop&concat never
# hits HBM.  Zero padding is built in a VMEM scratch; taps are packed into an
# im2col tile and contracted in a single MXU matmul with K = 9*Cin_i.
# ---------------------------------------------------------------------------
def _make_conv3x3_bn_relu_kernel(n_in, pad):
    def kernel(*args):
        x_refs = args[:n_in]
        w_refs = args[n_in:2 * n_in]
        scale_ref, shift_ref, o_ref = args[2 * n_in:2 * n_in + 3]
        pad_refs = args[2 * n_in + 3:2 * n_in + 3 + n_in]
        col_refs = args[2 * n_in + 3 + n_in:]

        Ho, Wo, Cout = o_ref.shape[1], o_ref.shape[2], o_ref.shape[3]
        acc = jnp.zeros((Ho * Wo, Cout), jnp.float32)
        for i in range(n_in):
            x_r, w_r, p_r, c_r = x_refs[i], w_refs[i], pad_refs[i], col_refs[i]
            H, W, C = x_r.shape[1], x_r.shape[2], x_r.shape[3]
            # Zero-padded copy of this input slice (padding fused in-kernel).
            p_r[...] = jnp.zeros_like(p_r)
            p_r[pad:pad + H, pad:pad + W, :] = x_r[0].astype(p_r.dtype)
            # im2col: (Ho*Wo, 9*C) tile, column order (kh, kw, cin).
            t = 0
            for kh in range(3):
                for kw in range(3):
                    win = p_r[kh:kh + Ho, kw:kw + Wo, :]
                    c_r[:, t * C:(t + 1) * C] = win.reshape(Ho * Wo, C)
                    t += 1
            acc = acc + jnp.dot(c_r[...], w_r[...],
                                preferred_element_type=jnp.float32)
        y = jnp.maximum(acc * scale_ref[...] + shift_ref[...], 0.0)
        o_ref[0] = y.reshape(Ho, Wo, Cout).astype(o_ref.dtype)

    return kernel


def conv3x3_bn_relu(xs, ws, conv_bias, gamma, beta, mean, var, padding,
                    out_dtype=_COMPUTE_DTYPE):
    """xs: list of NHWC inputs (virtual channel concat); ws: matching list of
    torch-layout (Cout, Cin_i, 3, 3) weight slices; BN in inference mode."""
    n_in = len(xs)
    B, H, W = xs[0].shape[0], xs[0].shape[1], xs[0].shape[2]
    Cout = ws[0].shape[0]
    Ho = H + 2 * padding - 2
    Wo = W + 2 * padding - 2
    Hp, Wp = H + 2 * padding, W + 2 * padding

    xs = [x.astype(_COMPUTE_DTYPE) for x in xs]
    # (Cout,Cin,3,3) -> (kh,kw,Cin,Cout) -> (9*Cin, Cout): matches im2col order.
    w_rs = [jnp.transpose(w, (2, 3, 1, 0)).reshape(9 * w.shape[1], Cout)
            .astype(_COMPUTE_DTYPE) for w in ws]
    scale = gamma / jnp.sqrt(var + _BN_EPS)
    shift = (conv_bias - mean) * scale + beta
    scale = scale.reshape(1, Cout).astype(jnp.float32)
    shift = shift.reshape(1, Cout).astype(jnp.float32)

    cins = [x.shape[3] for x in xs]
    in_specs = (
        [pl.BlockSpec((1, H, W, c), lambda b: (b, 0, 0, 0)) for c in cins]
        + [pl.BlockSpec((9 * c, Cout), lambda b: (0, 0)) for c in cins]
        + [pl.BlockSpec((1, Cout), lambda b: (0, 0)),
           pl.BlockSpec((1, Cout), lambda b: (0, 0))]
    )
    scratch_shapes = (
        [pltpu.VMEM((Hp, Wp, c), _COMPUTE_DTYPE) for c in cins]
        + [pltpu.VMEM((Ho * Wo, 9 * c), _COMPUTE_DTYPE) for c in cins]
    )

    # TODO(synk): for production-size decoder images, add halo row-band tiling
    # (grid over output rows) so the per-batch working set stays bounded; at
    # the small demo shapes one batch element per grid step fits VMEM easily.
    return pl.pallas_call(
        _make_conv3x3_bn_relu_kernel(n_in, padding),
        out_shape=jax.ShapeDtypeStruct((B, Ho, Wo, Cout), out_dtype),
        grid=(B,),
        in_specs=in_specs,
        out_specs=pl.BlockSpec((1, Ho, Wo, Cout), lambda b: (b, 0, 0, 0)),
        scratch_shapes=scratch_shapes,
        compiler_params=pltpu.CompilerParams(
            dimension_semantics=("parallel",),
            vmem_limit_bytes=_VMEM_LIMIT_BYTES,
        ),
    )(*xs, *w_rs, scale, shift)


# ---------------------------------------------------------------------------
# Crop helper (mirrors StackDecoder._crop_concat cropping; concat itself is
# fused into the first conv by splitting its weight along Cin).
# ---------------------------------------------------------------------------
def _crop_like_torch(bypass, target_hw):
    Hd, Wd = bypass.shape[1], bypass.shape[2]
    margin = Hd - target_hw
    c = margin // 2
    if margin % 2 == 1:
        return bypass[:, c:Hd - (c + 1), c:Wd - (c + 1), :]
    return bypass[:, c:Hd - c, c:Wd - c, :]


# ---------------------------------------------------------------------------
# StackDecoder forward
# ---------------------------------------------------------------------------
def stack_decoder_forward_nhwc(params, x_nhwc, down_nhwc, padding=1,
                               out_dtype=jnp.float32):
    """NHWC-in / NHWC-out decoder block (preferred for chained decoders)."""
    up = transpose_conv_2x2_s2(x_nhwc, params["tconv_w"], params["tconv_b"],
                               out_dtype=_COMPUTE_DTYPE)
    if down_nhwc is not None:
        down_c = _crop_like_torch(down_nhwc, up.shape[1]).astype(_COMPUTE_DTYPE)
        c_up = up.shape[-1]
        inputs = [up, down_c]
        w1s = [params["c1_w"][:, :c_up], params["c1_w"][:, c_up:]]
    else:
        inputs = [up]
        w1s = [params["c1_w"]]
    y = conv3x3_bn_relu(inputs, w1s, params["c1_b"],
                        params["bn1_g"], params["bn1_b"],
                        params["bn1_m"], params["bn1_v"], padding,
                        out_dtype=_COMPUTE_DTYPE)
    y = conv3x3_bn_relu([y], [params["c2_w"]], params["c2_b"],
                        params["bn2_g"], params["bn2_b"],
                        params["bn2_m"], params["bn2_v"], padding,
                        out_dtype=out_dtype)
    # Dropout2d(0.25): identity in inference mode.
    return y


def stack_decoder_forward(params, x_nchw, down_nchw, padding=1):
    """NCHW-in / NCHW-out wrapper matching the PyTorch module interface."""
    x = jnp.transpose(x_nchw, (0, 2, 3, 1))
    down = None if down_nchw is None else jnp.transpose(down_nchw, (0, 2, 3, 1))
    y = stack_decoder_forward_nhwc(params, x, down, padding=padding,
                                   out_dtype=jnp.float32)
    return jnp.transpose(y, (0, 3, 1, 2))


def init_params(key, in_channels, out_channels):
    ks = jax.random.split(key, 8)
    f32 = jnp.float32
    return {
        # ConvTranspose2d(in, out, k=2, s=2): weight (Cin, Cout, 2, 2)
        "tconv_w": 0.1 * jax.random.normal(ks[0], (in_channels, out_channels, 2, 2), f32),
        "tconv_b": 0.1 * jax.random.normal(ks[1], (out_channels,), f32),
        # convr1: Conv2d(in, out, 3) + BN(out)
        "c1_w": 0.1 * jax.random.normal(ks[2], (out_channels, in_channels, 3, 3), f32),
        "c1_b": 0.1 * jax.random.normal(ks[3], (out_channels,), f32),
        "bn1_g": 1.0 + 0.1 * jax.random.normal(ks[4], (out_channels,), f32),
        "bn1_b": 0.1 * jax.random.normal(ks[5], (out_channels,), f32),
        "bn1_m": jnp.zeros((out_channels,), f32),
        "bn1_v": jnp.ones((out_channels,), f32),
        # convr2: Conv2d(out, out, 3) + BN(out)
        "c2_w": 0.1 * jax.random.normal(ks[6], (out_channels, out_channels, 3, 3), f32),
        "c2_b": 0.1 * jax.random.normal(ks[7], (out_channels,), f32),
        "bn2_g": jnp.ones((out_channels,), f32),
        "bn2_b": jnp.zeros((out_channels,), f32),
        "bn2_m": jnp.zeros((out_channels,), f32),
        "bn2_v": jnp.ones((out_channels,), f32),
    }


if __name__ == "__main__":
    in_channels, out_channels = 8, 4
    B, H, W = 2, 8, 8
    key = jax.random.PRNGKey(0)
    kx, kd, kp = jax.random.split(key, 3)

    # NCHW inputs, matching the PyTorch module's conventions.
    x = jax.random.normal(kx, (B, in_channels, H, W), jnp.float32)
    # down_tensor slightly larger spatially (18x18) to exercise crop&concat;
    # after transpose-conv x is (B, out, 16, 16), concat gives in_channels = 8.
    down = jax.random.normal(kd, (B, out_channels, 2 * H + 2, 2 * W + 2), jnp.float32)

    params = init_params(kp, in_channels, out_channels)
    out = stack_decoder_forward(params, x, down, padding=1)
    out = jax.block_until_ready(out)

    assert out.shape == (B, out_channels, 2 * H, 2 * W), out.shape
    assert bool(jnp.all(jnp.isfinite(out)))
    print("KERNEL_OK")
</pallas_src>

<mosaic_0001>
module attributes {stable_mosaic.version = 11 : i64} {
  func.func @_tconv_kernel(%arg0: i32, %arg1: i32, %arg2: memref<1x8x8x8xbf16, #tpu.memory_space<vmem>>, %arg3: memref<2x8x8xbf16, #tpu.memory_space<vmem>>, %arg4: memref<1x8xf32, #tpu.memory_space<vmem>>, %arg5: memref<1x8x2x8x8xbf16, #tpu.memory_space<vmem>>) attributes {dimension_semantics = [#tpu.dimension_semantics<parallel>, #tpu.dimension_semantics<parallel>], iteration_bounds = array<i64: 2, 1>, scalar_prefetch = 0 : i64, scratch_operands = 0 : i64, tpu.core_type = #tpu.core_type<tc>, window_params = [{transform_indices = @transform_0, window_bounds = array<i64: 1, 8, 8, 8>}, {pipeline_mode = #tpu.pipeline_mode<synchronous>, transform_indices = @transform_1, window_bounds = array<i64: 2, 8, 8>}, {pipeline_mode = #tpu.pipeline_mode<synchronous>, transform_indices = @transform_2, window_bounds = array<i64: 1, 8>}, {transform_indices = @transform_3, window_bounds = array<i64: 1, 8, 2, 8, 8>}]} {
    %c0 = arith.constant 0 : index
    %c0_0 = arith.constant 0 : index
    %c0_1 = arith.constant 0 : index
    %c0_2 = arith.constant 0 : index
    %0 = vector.load %arg2[%c0, %c0_0, %c0_1, %c0_2] : memref<1x8x8x8xbf16, #tpu.memory_space<vmem>>, vector<1x8x8x8xbf16>
    %1 = vector.shape_cast %0 : vector<1x8x8x8xbf16> to vector<8x8x8xbf16>
    %2 = vector.shape_cast %1 : vector<8x8x8xbf16> to vector<64x8xbf16>
    %c0_3 = arith.constant 0 : index
    %c0_4 = arith.constant 0 : index
    %3 = vector.load %arg4[%c0_3, %c0_4] : memref<1x8xf32, #tpu.memory_space<vmem>>, vector<1x8xf32>
    %c0_5 = arith.constant 0 : index
    %c0_6 = arith.constant 0 : index
    %c0_7 = arith.constant 0 : index
    %4 = vector.load %arg3[%c0_5, %c0_6, %c0_7] : memref<2x8x8xbf16, #tpu.memory_space<vmem>>, vector<1x8x8xbf16>
    %5 = vector.shape_cast %4 : vector<1x8x8xbf16> to vector<8x8xbf16>
    %cst = arith.constant dense<0.000000e+00> : vector<64x8xf32>
    %6 = tpu.matmul %2, %5, %cst {dimension_numbers = #tpu.dot_dimension_numbers<[1], [0], [0], [1], [0, 0, 1, 1], [], []>} : vector<64x8xbf16>, vector<8x8xbf16>, vector<64x8xf32> -> vector<64x8xf32>
    %7 = vector.broadcast %3 : vector<1x8xf32> to vector<64x8xf32>
    %8 = arith.addf %6, %7 : vector<64x8xf32>
    %9 = vector.shape_cast %8 : vector<64x8xf32> to vector<8x8x8xf32>
    %10 = arith.truncf %9 : vector<8x8x8xf32> to vector<8x8x8xbf16>
    %c0_8 = arith.constant 0 : index
    %c0_9 = arith.constant 0 : index
    %c0_10 = arith.constant 0 : index
    %c0_11 = arith.constant 0 : index
    %c0_12 = arith.constant 0 : index
    %11 = vector.load %arg5[%c0_8, %c0_9, %c0_10, %c0_11, %c0_12] : memref<1x8x2x8x8xbf16, #tpu.memory_space<vmem>>, vector<1x8x1x8x8xbf16>
    %12 = vector.shape_cast %11 : vector<1x8x1x8x8xbf16> to vector<8x8x8xbf16>
    %13 = vector.shape_cast %10 : vector<8x8x8xbf16> to vector<1x8x1x8x8xbf16>
    tpu.vector_store %arg5[%c0_8, %c0_9, %c0_10, %c0_11, %c0_12], %13 {strides = array<i32>} : memref<1x8x2x8x8xbf16, #tpu.memory_space<vmem>>, vector<1x8x1x8x8xbf16>,
    %c1 = arith.constant 1 : index
    %c0_13 = arith.constant 0 : index
    %c0_14 = arith.constant 0 : index
    %14 = vector.load %arg3[%c1, %c0_13, %c0_14] : memref<2x8x8xbf16, #tpu.memory_space<vmem>>, vector<1x8x8xbf16>
    %15 = vector.shape_cast %14 : vector<1x8x8xbf16> to vector<8x8xbf16>
    %cst_15 = arith.constant dense<0.000000e+00> : vector<64x8xf32>
    %16 = tpu.matmul %2, %15, %cst_15 {dimension_numbers = #tpu.dot_dimension_numbers<[1], [0], [0], [1], [0, 0, 1, 1], [], []>} : vector<64x8xbf16>, vector<8x8xbf16>, vector<64x8xf32> -> vector<64x8xf32>
    %17 = vector.broadcast %3 : vector<1x8xf32> to vector<64x8xf32>
    %18 = arith.addf %16, %17 : vector<64x8xf32>
    %19 = vector.shape_cast %18 : vector<64x8xf32> to vector<8x8x8xf32>
    %20 = arith.truncf %19 : vector<8x8x8xf32> to vector<8x8x8xbf16>
    %c0_16 = arith.constant 0 : index
    %c0_17 = arith.constant 0 : index
    %c1_18 = arith.constant 1 : index
    %c0_19 = arith.constant 0 : index
    %c0_20 = arith.constant 0 : index
    %21 = vector.load %arg5[%c0_16, %c0_17, %c1_18, %c0_19, %c0_20] : memref<1x8x2x8x8xbf16, #tpu.memory_space<vmem>>, vector<1x8x1x8x8xbf16>
    %22 = vector.shape_cast %21 : vector<1x8x1x8x8xbf16> to vector<8x8x8xbf16>
    %23 = vector.shape_cast %20 : vector<8x8x8xbf16> to vector<1x8x1x8x8xbf16>
    tpu.vector_store %arg5[%c0_16, %c0_17, %c1_18, %c0_19, %c0_20], %23 {strides = array<i32>} : memref<1x8x2x8x8xbf16, #tpu.memory_space<vmem>>, vector<1x8x1x8x8xbf16>,
    return
  }
  func.func @transform_0(%arg0: i32, %arg1: i32) -> (i32, i32, i32, i32) {
    %c0_i32 = arith.constant 0 : i32
    %c0_i32_0 = arith.constant 0 : i32
    %c0_i32_1 = arith.constant 0 : i32
    return %arg0, %arg1, %c0_i32, %c0_i32_0 : i32, i32, i32, i32
  }
  func.func @transform_1(%arg0: i32, %arg1: i32) -> (i32, i32, i32) {
    %c0_i32 = arith.constant 0 : i32
    %c0_i32_0 = arith.constant 0 : i32
    %c0_i32_1 = arith.constant 0 : i32
    %c0_i32_2 = arith.constant 0 : i32
    return %c0_i32, %c0_i32_0, %c0_i32_1 : i32, i32, i32
  }
  func.func @transform_2(%arg0: i32, %arg1: i32) -> (i32, i32) {
    %c0_i32 = arith.constant 0 : i32
    %c0_i32_0 = arith.constant 0 : i32
    %c0_i32_1 = arith.constant 0 : i32
    return %c0_i32, %c0_i32_0 : i32, i32
  }
  func.func @transform_3(%arg0: i32, %arg1: i32) -> (i32, i32, i32, i32, i32) {
    %c0_i32 = arith.constant 0 : i32
    %c0_i32_0 = arith.constant 0 : i32
    %c0_i32_1 = arith.constant 0 : i32
    %c0_i32_2 = arith.constant 0 : i32
    return %arg0, %arg1, %c0_i32, %c0_i32_0, %c0_i32_1 : i32, i32, i32, i32, i32
  }
}

</mosaic_0001>

<llo_original>
// kernel: tpu_custom_call.1
$region0: #{tpu_custom_call.1}
  #allocation0 [shape = 'u32[]', space=smem, size = 0x4, offset = 0x4, fixed_abs, tag = 'smem constant byte address 0x4 - core index']
  #allocation1 [shape = 'u32[72,128]{1,0:T(1,128)}', space=vmem, size = 0x9000, scoped, tag = 'internal scratch']
  %s0 = inlined_call_operand.hbm [shape: bf16[2,8,8,8], index: 0, kind: input, shape index: {}]
  %s1 = inlined_call_operand.hbm [shape: bf16[2,8,8], index: 1, kind: input, shape index: {}]
  %s2 = inlined_call_operand.vmem [shape: f32[1,8], index: 2, kind: input, shape index: {}]
  %s3 = inlined_call_operand.hbm [shape: bf16[2,8,2,8,8], index: 3, kind: output, shape index: {}]
  %s4 = sld [smem:[#allocation0]]
  $region53: #{tpu_custom_call.1} parent=0
    _
  %s6 = ssub.s32 1, %s4
  %s7 = scalar_select 0, %s6, %s4
  $region1: #{tpu_custom_call.1} parent=0
    #allocation2 [shape = 'u8[32768]{0}', space=vmem, size = 0x8000, scoped, tag = 'input window, operand 0']
    #allocation3 [shape = 's32[2]{0}', space=sflag, size = 0x8, scoped, tag = 'scoped memory for tpu_custom_call.1']
    #allocation4 [shape = 's32[2]{0}', space=sflag, size = 0x8, scoped, tag = 'scoped memory for tpu_custom_call.1']
    #allocation5 [shape = 'u8[4096]{0}', space=vmem, size = 0x1000, scoped, tag = 'input window, operand 1, single buffered']
    #allocation6 [shape = 's32[1]{0}', space=sflag, size = 0x4, scoped, tag = 'scoped memory for tpu_custom_call.1']
    #allocation7 [shape = 'u8[65536]{0}', space=vmem, size = 0x10000, scoped, tag = 'output window, operand 0']
    %8 = vsyncpa [#allocation3], 0
    %s9 = scalar_lea.sflag [#allocation3], 1
    %10 = vsyncpa %s9, 0
    %11 = vsyncpa [#allocation6], 0
    %12 = vsyncpa [#allocation4], 0
    %s13 = scalar_lea.sflag [#allocation4], 1
    %14 = vsyncpa %s13, 0
    loop: start=0, step=1, limit=4
    $region2: #{tpu_custom_call.1} parent=1 // loop_pre_header
      _
    $region3: #{tpu_custom_call.1} parent=1 // loop_header
      %s16 = sphi 0, %s20
      %p17 = scmp.ge.s32.totalorder %s16, 4
      %s23 = sphi 0, %s35
      %s24 = sphi 0, %s31
      %s25 = sphi 0, %s23
      %s26 = sphi 0, %s24
      %s27 = sphi 0, %s25
      %s28 = sphi 0, %s26
      %s40 = sphi 0, %s42
      %s43 = sphi 0, %s40
      %s44 = sphi 0, %s43
      %s60 = sphi 0, %s44
      %s64 = sphi 0, %s64
      %s66 = sphi 0, %s64
      %s67 = sphi 0, %s66
      %s81 = sphi 0, %s67
      %s85 = sphi 0, %s85
      %s87 = sphi 0, %s85
      %s88 = sphi 0, %s87
      %s102 = sphi 0, %s88
      %s110 = sphi 0, %s112
      %s113 = sphi 0, %s110
      %s114 = sphi 0, %s113
      %s130 = sphi 0, %s114
    $region4: #{tpu_custom_call.1} parent=1 // loop_header_branch
      %19 = sbr.rel (%p17) target = $region8
    $region5: #{tpu_custom_call.1} parent=1 // loop_body
      %s21 = ssub.s32 %s16, 1
      %s22 = ssub.s32 %s16, 2
      %s29 = sadd.s32 1, %s24
      %p30 = scmp.ge.s32.totalorder %s29, 1
      %s31 = scalar_select %p30, 0, %s29
      %s32 = sadd.s32 1, %s23
      %s33 = scalar_select %p30, %s32, %s23
      %p34 = scmp.ge.s32.totalorder %s33, 2
      %s35 = scalar_select %p34, 0, %s33
      %s36 = ssub.s32 %s23, %s35
      %s37 = ssub.s32 %s24, %s31
      %s38 = sor.u32 %s36, %s37
      %p39 = scmp.eq.s32.totalorder %s38, 0
      %s41 = sadd.s32 %s40, 1
      %s42 = scalar_select %p39, %s40, %s41
      %p45 = pneg %p39
      %p46 = scmp.eq.s32.totalorder %s16, 1
      %p47 = por %p45, %p46
      %p48 = scmp.ne.s32.totalorder %s40, %s43
      %p49 = scmp.eq.s32.totalorder %s16, 0
      %p50 = por %p48, %p49
      %p51 = scmp.ne.s32.totalorder %s40, %s43
      %p52 = scmp.eq.s32.totalorder %s21, 1
      %p53 = por %p51, %p52
      %p54 = scmp.ne.s32.totalorder %s43, %s44
      %p55 = scmp.eq.s32.totalorder %s21, 0
      %p56 = por %p54, %p55
      %p57 = scmp.ne.s32.totalorder %s43, %s44
      %p58 = scmp.eq.s32.totalorder %s22, 1
      %p59 = por %p57, %p58
      %p61 = scmp.ne.s32.totalorder %s44, %s60
      %p62 = scmp.eq.s32.totalorder %s22, 0
      %p63 = por %p61, %p62
      %s65 = sadd.s32 %s64, 1
      %p68 = scmp.eq.s32.totalorder %s16, 1
      %p69 = scmp.ne.s32.totalorder %s64, %s66
      %p70 = scmp.eq.s32.totalorder %s16, 0
      %p71 = por %p69, %p70
      %p72 = scmp.ne.s32.totalorder %s64, %s66
      %p73 = scmp.eq.s32.totalorder %s21, 1
      %p74 = por %p72, %p73
      %p75 = scmp.ne.s32.totalorder %s66, %s67
      %p76 = scmp.eq.s32.totalorder %s21, 0
      %p77 = por %p75, %p76
      %p78 = scmp.ne.s32.totalorder %s66, %s67
      %p79 = scmp.eq.s32.totalorder %s22, 1
      %p80 = por %p78, %p79
      %p82 = scmp.ne.s32.totalorder %s67, %s81
      %p83 = scmp.eq.s32.totalorder %s22, 0
      %p84 = por %p82, %p83
      %s86 = sadd.s32 %s85, 1
      %p89 = scmp.eq.s32.totalorder %s16, 1
      %p90 = scmp.ne.s32.totalorder %s85, %s87
      %p91 = scmp.eq.s32.totalorder %s16, 0
      %p92 = por %p90, %p91
      %p93 = scmp.ne.s32.totalorder %s85, %s87
      %p94 = scmp.eq.s32.totalorder %s21, 1
      %p95 = por %p93, %p94
      %p96 = scmp.ne.s32.totalorder %s87, %s88
      %p97 = scmp.eq.s32.totalorder %s21, 0
      %p98 = por %p96, %p97
      %p99 = scmp.ne.s32.totalorder %s87, %s88
      %p100 = scmp.eq.s32.totalorder %s22, 1
      %p101 = por %p99, %p100
      %p103 = scmp.ne.s32.totalorder %s88, %s102
      %p104 = scmp.eq.s32.totalorder %s22, 0
      %p105 = por %p103, %p104
      %s106 = ssub.s32 %s23, %s35
      %s107 = ssub.s32 %s24, %s31
      %s108 = sor.u32 %s106, %s107
      %p109 = scmp.eq.s32.totalorder %s108, 0
      %s111 = sadd.s32 %s110, 1
      %s112 = scalar_select %p109, %s110, %s111
      %p115 = pneg %p109
      %p116 = scmp.eq.s32.totalorder %s16, 1
      %p117 = por %p115, %p116
      %p118 = scmp.ne.s32.totalorder %s110, %s113
      %p119 = scmp.eq.s32.totalorder %s16, 0
      %p120 = por %p118, %p119
      %p121 = scmp.ne.s32.totalorder %s110, %s113
      %p122 = scmp.eq.s32.totalorder %s21, 1
      %p123 = por %p121, %p122
      %p124 = scmp.ne.s32.totalorder %s113, %s114
      %p125 = scmp.eq.s32.totalorder %s21, 0
      %p126 = por %p124, %p125
      %p127 = scmp.ne.s32.totalorder %s113, %s114
      %p128 = scmp.eq.s32.totalorder %s22, 1
      %p129 = por %p127, %p128
      %p131 = scmp.ne.s32.totalorder %s114, %s130
      %p132 = scmp.eq.s32.totalorder %s22, 0
      %p133 = por %p131, %p132
      %p134 = scmp.le.s32.totalorder 1, %s16
      %p135 = scmp.lt.s32.totalorder %s16, 3
      %p136 = pnand %p134, %p135
      %p137 = pneg %p136
      // Predicated region
      $region9: #{tpu_custom_call.1} parent=5 // pred_check
        _
      $region10: #{tpu_custom_call.1} parent=5 // pred_check_branch
        %139 = sbr.rel (%p136) target = $region12
      $region11: #{tpu_custom_call.1} parent=5 // pred_region
        %s140 = ssub.s32 %s16, 1
        // Predicated region
        $region13: #{tpu_custom_call.1} parent=11 // pred_check
          %p141 = pneg %p77
        $region14: #{tpu_custom_call.1} parent=11 // pred_check_branch
          %143 = sbr.rel (%p141) target = $region16
        $region15: #{tpu_custom_call.1} parent=11 // pred_region
          %145 = vsyncadd [#allocation6], 0
          %s146 = sshll.u32 %s1, 4
          %s147 = int_to_ptr.hbm [resolvable:$true] %s146
          %s148 = sshll.u32 [#allocation5], 4
          %s149 = int_to_ptr.vmem [resolvable:$true] %s148
          %154 = dma.hbm_to_vmem [thread:$0]  %s147, 128, %s149, [#allocation6], 64, 64, 4
        $region16: #{tpu_custom_call.1} parent=11 // pred_fallthru
          _
        // Predicated region
        $region17: #{tpu_custom_call.1} parent=11 // pred_check
          %p155 = pneg %p98
        $region18: #{tpu_custom_call.1} parent=11 // pred_check_branch
          %157 = sbr.rel (%p155) target = $region20
        $region19: #{tpu_custom_call.1} parent=11 // pred_region
          _
        $region20: #{tpu_custom_call.1} parent=11 // pred_fallthru
          _
      $region12: #{tpu_custom_call.1} parent=5 // pred_fallthru
        _
      %p158 = scmp.lt.s32.totalorder %s16, 2
      // Predicated region
      $region21: #{tpu_custom_call.1} parent=5 // pred_check
        %p159 = pneg %p158
      $region22: #{tpu_custom_call.1} parent=5 // pred_check_branch
        %161 = sbr.rel (%p159) target = $region24
      $region23: #{tpu_custom_call.1} parent=5 // pred_region
        // Predicated region
        $region25: #{tpu_custom_call.1} parent=23 // pred_check
          %p162 = pneg %p50
        $region26: #{tpu_custom_call.1} parent=23 // pred_check_branch
          %164 = sbr.rel (%p162) target = $region28
        $region27: #{tpu_custom_call.1} parent=23 // pred_region
          %s165 = sand.u32 %s40, 1
          %s166 = scalar_lea.sflag [#allocation3], %s165
          %s167 = sand.u32 %s40, 1
          %s168 = smul.addr %s167, 32
          %s169 = scalar_lea.vmem [#allocation2], %s168
          %s170 = smul.u32 8, %s24
          %172 = vsyncadd %s166, 0
          %s173 = smul.addr %s23, 8
          %s174 = sadd.s32 %s170, %s173
          %s175 = smul.addr %s174, 4
          %s176 = scalar_lea.hbm %s0, %s175
          %s177 = sshll.u32 %s176, 4
          %s178 = int_to_ptr.hbm [resolvable:$true] %s177
          %s179 = sshll.u32 %s169, 4
          %s180 = int_to_ptr.vmem [resolvable:$true] %s179
          %185 = dma.hbm_to_vmem [thread:$0]  %s178, 512, %s180, %s166, 64, 64, 4
        $region28: #{tpu_custom_call.1} parent=23 // pred_fallthru
          _
      $region24: #{tpu_custom_call.1} parent=5 // pred_fallthru
        _
      %p186 = scmp.le.s32.totalorder 1, %s16
      %p187 = scmp.lt.s32.totalorder %s16, 3
      %p188 = pnand %p186, %p187
      %p189 = pneg %p188
      // Predicated region
      $region29: #{tpu_custom_call.1} parent=5 // pred_check
        _
      $region30: #{tpu_custom_call.1} parent=5 // pred_check_branch
        %191 = sbr.rel (%p188) target = $region32
      $region31: #{tpu_custom_call.1} parent=5 // pred_region
        %s192 = ssub.s32 %s16, 1
        %s193 = sand.u32 %s43, 1
        %s194 = scalar_lea.sflag [#allocation3], %s193
        %s195 = sand.u32 %s43, 1
        %s196 = smul.addr %s195, 32
        %s197 = scalar_lea.vmem [#allocation2], %s196
        // Predicated region
        $region33: #{tpu_custom_call.1} parent=31 // pred_check
          %p198 = pneg %p56
        $region34: #{tpu_custom_call.1} parent=31 // pred_check_branch
          %200 = sbr.rel (%p198) target = $region36
        $region35: #{tpu_custom_call.1} parent=31 // pred_region
          %202 = dma.done %s194, 512
        $region36: #{tpu_custom_call.1} parent=31 // pred_fallthru
          _
        // Predicated region
        $region37: #{tpu_custom_call.1} parent=31 // pred_check
          %p203 = pneg %p77
        $region38: #{tpu_custom_call.1} parent=31 // pred_check_branch
          %205 = sbr.rel (%p203) target = $region40
        $region39: #{tpu_custom_call.1} parent=31 // pred_region
          %207 = dma.done [#allocation6], 128
        $region40: #{tpu_custom_call.1} parent=31 // pred_fallthru
          _
        %s208 = sand.u32 %s43, 1
        %s209 = scalar_lea.sflag [#allocation3], %s208
        %s210 = sand.u32 %s43, 1
        %s211 = smul.addr %s210, 32
        %s212 = scalar_lea.vmem [#allocation2], %s211
        %p213 = pneg %p56
        %p214 = pneg %p53
        %p215 = pneg %p77
        %p216 = pneg %p74
        %p217 = pneg %p98
        %p218 = pneg %p95
        %p219 = pneg %p126
        %p220 = pneg %p123
        %s221 = sand.u32 %s113, 1
        %s222 = scalar_lea.sflag [#allocation4], %s221
        %s223 = sand.u32 %s113, 1
        %s224 = smul.addr %s223, 64
        %s225 = scalar_lea.vmem [#allocation7], %s224
        %s226 = smul.u32 8, %s26
        %s227 = smul.u32 8, %s26
        %v229 = vld [vmem:[%s197] sm:$0xf]
        %v230 = vld [vmem:[%s197 + $0x4] sm:$0xf]
        %v231 = vld [vmem:[%s197 + $0x8] sm:$0xf]
        %v232 = vld [vmem:[%s197 + $0xc] sm:$0xf]
        %v233 = vld [vmem:[%s197 + $0x10] sm:$0xf]
        %v234 = vld [vmem:[%s197 + $0x14] sm:$0xf]
        %v235 = vld [vmem:[%s197 + $0x18] sm:$0xf]
        %v236 = vld [vmem:[%s197 + $0x1c] sm:$0xf]
        %v237 = vld [vmem:[%s2] sm:$0x1]
        %v238 = vld [vmem:[#allocation5] sm:$0xf]
        %v240 = vperm.slane %v237, 0
        %v250 = vunpack.c.l.b16 %v229
        %v251 = vunpack.c.l.b16 %v230
        %v252 = vunpack.c.l.b16 %v231
        %v253 = vunpack.c.l.b16 %v232
        %v254 = vunpack.c.l.b16 %v233
        %v255 = vunpack.c.l.b16 %v234
        %v256 = vunpack.c.l.b16 %v235
        %v257 = vunpack.c.l.b16 %v236
        %v258 = vpack.c.b16 %v251, %v250
        %v259 = vpack.c.b16 %v253, %v252
        %v260 = vpack.c.b16 %v255, %v254
        %v261 = vpack.c.b16 %v257, %v256
        %vm262 = vcmask 64512
        %v264 = vsel %vm262, %v258, 0
        %v267 = vsel %vm262, %v259, 0
        %v270 = vsel %vm262, %v260, 0
        %v273 = vsel %vm262, %v261, 0
        %vm275 = vcmask 1043456
        %v277 = vsel %vm275, %v238, 0
        %279 = vmatpush.bf16.msra.mxu0 0
        %280 = vmatpush.bf16.msra.mxu0 0
        %281 = vmatpush.bf16.msra.mxu0 0
        %282 = vmatpush.bf16.msra.mxu0 0
        %283 = vmatpush.bf16.msra.mxu0 0
        %284 = vmatpush.bf16.msra.mxu0 0
        %285 = vmatpush.bf16.msra.mxu0 0
        %286 = vmatpush.bf16.msra.mxu0 %v277
        %287 = vmatmul.bf16.gmra.mxu0 %v264
        %v288 = vpop.f32.mrf.mxu0
        %v289 = vadd.f32 %v240, %v288
        %v290 = vpop.f32.mrf.mxu0
        %v291 = vadd.f32 %v240, %v290
        %292 = vmatmul.bf16.gmra.mxu0 %v267
        %v293 = vpop.f32.mrf.mxu0
        %v294 = vadd.f32 %v240, %v293
        %v295 = vpop.f32.mrf.mxu0
        %v296 = vadd.f32 %v240, %v295
        %297 = vmatmul.bf16.gmra.mxu0 %v270
        %v298 = vpop.f32.mrf.mxu0
        %v299 = vadd.f32 %v240, %v298
        %v300 = vpop.f32.mrf.mxu0
        %v301 = vadd.f32 %v240, %v300
        %302 = vmatmul.bf16.gmra.mxu0 %v273
        %v303 = vpop.f32.mrf.mxu0
        %v304 = vadd.f32 %v240, %v303
        %v305 = vpop.f32.mrf.mxu0
        %v306 = vadd.f32 %v240, %v305
        %307 = vdwg.mxu0
        %v308 = vpack.c.bf16 %v289, %v289
        %v309 = vpack.c.bf16 %v291, %v291
        %v310 = vpack.c.bf16 %v294, %v294
        %v311 = vpack.c.bf16 %v296, %v296
        %v312 = vpack.c.bf16 %v299, %v299
        %v313 = vpack.c.bf16 %v301, %v301
        %v314 = vpack.c.bf16 %v304, %v304
        %v315 = vpack.c.bf16 %v306, %v306
        %vm316 = vcmask 60416
        %317 = vst.msk [vmem:[%s225] sm:$0xf] %vm316, %v308
        %318 = vst.msk [vmem:[%s225 + $0x8] sm:$0xf] %vm316, %v309
        %319 = vst.msk [vmem:[%s225 + $0x10] sm:$0xf] %vm316, %v310
        %320 = vst.msk [vmem:[%s225 + $0x18] sm:$0xf] %vm316, %v311
        %321 = vst.msk [vmem:[%s225 + $0x20] sm:$0xf] %vm316, %v312
        %322 = vst.msk [vmem:[%s225 + $0x28] sm:$0xf] %vm316, %v313
        %323 = vst.msk [vmem:[%s225 + $0x30] sm:$0xf] %vm316, %v314
        %324 = vst.msk [vmem:[%s225 + $0x38] sm:$0xf] %vm316, %v315
        %s325 = scalar_lea.vmem [#allocation5], 4
        %v326 = vld [vmem:[%s325] sm:$0xf]
        %v328 = vsel %vm275, %v326, 0
        %330 = vmatpush.bf16.msra.mxu0 0
        %331 = vmatpush.bf16.msra.mxu0 0
        %332 = vmatpush.bf16.msra.mxu0 0
        %333 = vmatpush.bf16.msra.mxu0 0
        %334 = vmatpush.bf16.msra.mxu0 0
        %335 = vmatpush.bf16.msra.mxu0 0
        %336 = vmatpush.bf16.msra.mxu0 0
        %337 = vmatpush.bf16.msra.mxu0 %v328
        %338 = vmatmul.bf16.gmra.mxu0 %v264
        %v339 = vpop.f32.mrf.mxu0
        %v340 = vadd.f32 %v240, %v339
        %v341 = vpop.f32.mrf.mxu0
        %v342 = vadd.f32 %v240, %v341
        %343 = vmatmul.bf16.gmra.mxu0 %v267
        %v344 = vpop.f32.mrf.mxu0
        %v345 = vadd.f32 %v240, %v344
        %v346 = vpop.f32.mrf.mxu0
        %v347 = vadd.f32 %v240, %v346
        %348 = vmatmul.bf16.gmra.mxu0 %v270
        %v349 = vpop.f32.mrf.mxu0
        %v350 = vadd.f32 %v240, %v349
        %v351 = vpop.f32.mrf.mxu0
        %v352 = vadd.f32 %v240, %v351
        %353 = vmatmul.bf16.gmra.mxu0 %v273
        %v354 = vpop.f32.mrf.mxu0
        %v355 = vadd.f32 %v240, %v354
        %v356 = vpop.f32.mrf.mxu0
        %v357 = vadd.f32 %v240, %v356
        %358 = vdwg.mxu0
        %v359 = vpack.c.bf16 %v340, %v340
        %v360 = vpack.c.bf16 %v342, %v342
        %v361 = vpack.c.bf16 %v345, %v345
        %v362 = vpack.c.bf16 %v347, %v347
        %v363 = vpack.c.bf16 %v350, %v350
        %v364 = vpack.c.bf16 %v352, %v352
        %v365 = vpack.c.bf16 %v355, %v355
        %v366 = vpack.c.bf16 %v357, %v357
        %s367 = scalar_lea.vmem %s225, 4 [#allocation7]
        %368 = vst.msk [vmem:[%s367] sm:$0xf] %vm316, %v359
        %369 = vst.msk [vmem:[%s367 + $0x8] sm:$0xf] %vm316, %v360
        %370 = vst.msk [vmem:[%s367 + $0x10] sm:$0xf] %vm316, %v361
        %371 = vst.msk [vmem:[%s367 + $0x18] sm:$0xf] %vm316, %v362
        %372 = vst.msk [vmem:[%s367 + $0x20] sm:$0xf] %vm316, %v363
        %373 = vst.msk [vmem:[%s367 + $0x28] sm:$0xf] %vm316, %v364
        %374 = vst.msk [vmem:[%s367 + $0x30] sm:$0xf] %vm316, %v365
        %375 = vst.msk [vmem:[%s367 + $0x38] sm:$0xf] %vm316, %v366
        %s376 = sand.u32 %s113, 1
        %s377 = scalar_lea.sflag [#allocation4], %s376
        %s378 = sand.u32 %s113, 1
        %s379 = smul.addr %s378, 64
        %s380 = scalar_lea.vmem [#allocation7], %s379
        // Predicated region
        $region41: #{tpu_custom_call.1} parent=31 // pred_check
          %p381 = pneg %p123
        $region42: #{tpu_custom_call.1} parent=31 // pred_check_branch
          %383 = sbr.rel (%p381) target = $region44
        $region43: #{tpu_custom_call.1} parent=31 // pred_region
          %s384 = smul.u32 8, %s26
          %386 = vsyncadd %s377, 0
          %s387 = smul.addr %s384, 2
          %s388 = smul.addr %s25, 16
          %s389 = sadd.s32 %s387, %s388
          %s390 = smul.addr %s389, 4
          %s391 = scalar_lea.hbm %s3, %s390
          %s392 = sshll.u32 %s380, 4
          %s393 = int_to_ptr.vmem [resolvable:$true] %s392
          %s394 = sshll.u32 %s391, 4
          %s395 = int_to_ptr.hbm [resolvable:$true] %s394
          %400 = dma.vmem_to_hbm [thread:$0]  %s393, 1024, %s395, %s377, 64, 64, 4
        $region44: #{tpu_custom_call.1} parent=31 // pred_fallthru
          _
      $region32: #{tpu_custom_call.1} parent=5 // pred_fallthru
        _
      %p401 = scmp.le.s32.totalorder 2, %s16
      // Predicated region
      $region45: #{tpu_custom_call.1} parent=5 // pred_check
        %p402 = pneg %p401
      $region46: #{tpu_custom_call.1} parent=5 // pred_check_branch
        %404 = sbr.rel (%p402) target = $region48
      $region47: #{tpu_custom_call.1} parent=5 // pred_region
        %s405 = ssub.s32 %s16, 2
        // Predicated region
        $region49: #{tpu_custom_call.1} parent=47 // pred_check
          %p406 = pneg %p129
        $region50: #{tpu_custom_call.1} parent=47 // pred_check_branch
          %408 = sbr.rel (%p406) target = $region52
        $region51: #{tpu_custom_call.1} parent=47 // pred_region
          %s409 = sand.u32 %s114, 1
          %s410 = scalar_lea.sflag [#allocation4], %s409
          %s411 = sand.u32 %s114, 1
          %s412 = smul.addr %s411, 64
          %s413 = scalar_lea.vmem [#allocation7], %s412
          %415 = dma.done %s410, 1024
        $region52: #{tpu_custom_call.1} parent=47 // pred_fallthru
          _
      $region48: #{tpu_custom_call.1} parent=5 // pred_fallthru
        _
    $region6: #{tpu_custom_call.1} parent=1 // loop_footer
      %s20 = sadd.s32 1, %s16
    $region7: #{tpu_custom_call.1} parent=1 // loop_footer_branch
      %15 = sbr.rel target = $region3
    $region8: #{tpu_custom_call.1} parent=1 // loop_exit
      _
    %416 = vsyncpa [#allocation3], 1
    %s417 = scalar_lea.sflag [#allocation3], 1
    %418 = vsyncpa %s417, 1
    %419 = vsyncpa [#allocation6], 1
    %420 = vsyncpa [#allocation4], 1
    %s421 = scalar_lea.sflag [#allocation4], 1
    %422 = vsyncpa %s421, 1

</llo_original>
